<compile_context>
chip_gen: v5e
topology: v5e:2x2
jax: 0.10.0
libtpu: 0.0.40
codegen_flags: <defaults>
</compile_context>

<pallas_src>
import functools

import jax
import jax.numpy as jnp
from jax.experimental import pallas as pl
from jax.experimental.pallas import tpu as pltpu


def _round_up(a: int, b: int) -> int:
    return (a + b - 1) // b * b


def patch_embed_kernel(x_ref, w_ref, b_ref, o_ref):
    # Hot path: patch-projection matmul (full K per step, f32 accumulation) + bias.
    o_ref[...] = (
        jnp.dot(x_ref[...], w_ref[...], preferred_element_type=jnp.float32)
        + b_ref[...]
    ).astype(o_ref.dtype)


def patch_embed(x, weight, bias, patch_size, *, compute_dtype=jnp.bfloat16):
    """PatchEmbed.forward.

    x: (B, C, H, W) NCHW like PyTorch.  weight: (E, C, p, p).  bias: (E,).
    Returns (B, num_patches, E) in x.dtype, exactly like the module.

    compute_dtype: MXU input dtype for activations/weights (accumulation is
    always f32).  Default bf16 halves x/w HBM traffic and runs the MXU at full
    rate; pass jnp.float32 for tight parity with the f32 conv reference.
    """
    B, C, H, W = x.shape
    p = patch_size
    assert H % p == 0 and W % p == 0
    Hp, Wp = H // p, W // p
    N = Hp * Wp
    E = weight.shape[0]
    K = C * p * p
    M = B * N
    out_dtype = x.dtype

    # Patch extraction as reshape+transpose.  With allow_input_fusion below XLA
    # fuses this (and the bf16 cast) into the pallas_call operand, avoiding a
    # separate HBM materialisation of xp.
    # TODO(synk): fold this patchify into the kernel itself (grid over (B, Hp),
    # DMA contiguous (C, p, W) slabs and rearrange in-kernel) to guarantee a
    # single activation read even when XLA declines to fuse.
    xp = x.reshape(B, C, Hp, p, Wp, p)
    xp = jnp.transpose(xp, (0, 2, 4, 1, 3, 5)).reshape(M, K)       # (M, K)
    w2d = weight.reshape(E, K).T                                   # (K, E)
    b2d = bias.reshape(1, E).astype(jnp.float32)                   # (1, E)

    cdt = jnp.dtype(compute_dtype)
    xp = xp.astype(cdt)
    w2d = w2d.astype(cdt)

    # Output lane dim: pad only when E is not already 128-aligned (keeps the
    # unmasked lane-dense vst path; weight/bias pads are tiny, output slice
    # only happens in the small-E case).
    Ep = E if E % 128 == 0 else _round_up(E, 128)
    if Ep != E:
        w2d = jnp.pad(w2d, ((0, 0), (0, Ep - E)))
        b2d = jnp.pad(b2d, ((0, 0), (0, Ep - E)))

    in_item = cdt.itemsize
    out_item = jnp.dtype(out_dtype).itemsize

    # ---- VMEM-budget-driven row tile ---------------------------------------
    # ~75% of physical VMEM: ~48 MiB on v7x (64 MiB), ~96 MiB on v5e/v6e (128 MiB).
    try:
        vmem_cap = int(pltpu.get_tpu_info().vmem_capacity_bytes)
    except Exception:
        vmem_cap = 64 * 1024 * 1024            # conservative (v7x) fallback
    budget = (vmem_cap * 3) // 4

    resident = 2 * (K * Ep * in_item + Ep * 4)   # weight + bias (double-buffered)
    per_row = 2 * (K * in_item + Ep * out_item)  # x tile + out tile (double-buffered)
    tm_cap = max(8, ((budget - resident) // max(per_row, 1)) // 8 * 8)
    tm_cap = min(tm_cap, 2048)                   # step overhead is amortised long before this

    # Balance the grid; keep >= 2 row blocks so both v7x TensorCores get work.
    n_blocks = pl.cdiv(M, tm_cap)
    if n_blocks < 2 and M > 8:
        n_blocks = 2
    tm = _round_up(pl.cdiv(M, n_blocks), 8)
    grid0 = pl.cdiv(M, tm)

    cost = pl.CostEstimate(
        flops=2 * M * K * Ep,
        transcendentals=0,
        bytes_accessed=in_item * (M * K + K * Ep) + 4 * Ep + out_item * M * Ep,
    )

    out = pl.pallas_call(
        patch_embed_kernel,
        out_shape=jax.ShapeDtypeStruct((M, Ep), out_dtype),
        grid_spec=pltpu.PrefetchScalarGridSpec(
            num_scalar_prefetch=0,
            grid=(grid0,),
            in_specs=[
                # Patch rows: full-extent K (no HBM pad); partial last row
                # block is masked on writeback by Pallas.
                pl.BlockSpec((tm, K), lambda i: (i, 0)),
                # Whole weight / bias resident across the grid (fetched once).
                # (pipeline_mode=pl.Buffered(1) would halve their VMEM, but the
                #  budget-driven tm already leaves ample headroom at these sizes.)
                pl.BlockSpec((K, Ep), lambda i: (0, 0)),
                pl.BlockSpec((1, Ep), lambda i: (0, 0)),
            ],
            out_specs=pl.BlockSpec((tm, Ep), lambda i: (i, 0)),
        ),
        compiler_params=pltpu.CompilerParams(
            dimension_semantics=("parallel",),
            vmem_limit_bytes=int(budget),
            allow_input_fusion=[True, True, True],
        ),
        cost_estimate=cost,
    )(xp, w2d, b2d)

    if Ep != E:
        out = out[:, :E]
    return out.reshape(B, N, E)


def _conv_reference(x, weight, bias, p):
    """Plain-JAX strided conv == PyTorch Conv2d(kernel=stride=p) + flatten/transpose."""
    E = weight.shape[0]
    ref = jax.lax.conv_general_dilated(
        x, weight, window_strides=(p, p), padding="VALID",
        dimension_numbers=("NCHW", "OIHW", "NCHW"),
    ) + bias.reshape(1, E, 1, 1)
    return ref.reshape(x.shape[0], E, -1).transpose(0, 2, 1)


if __name__ == "__main__":
    # Small shapes consistent with the module: img_size=16, patch_size=4,
    # in_chans=4, embed_dim=32, batch=2  ->  num_patches = (16 // 4) ** 2 = 16.
    B, C, H, W = 2, 4, 16, 16
    p = 4
    E = 32

    key = jax.random.PRNGKey(0)
    kx, kw, kb = jax.random.split(key, 3)
    x = jax.random.normal(kx, (B, C, H, W), dtype=jnp.float32)
    weight = jax.random.normal(kw, (E, C, p, p), dtype=jnp.float32) * 0.02
    bias = jax.random.normal(kb, (E,), dtype=jnp.float32) * 0.02

    ref = _conv_reference(x, weight, bias, p)

    # Default path: bf16 MXU inputs, f32 accumulation (loose tolerance).
    fn = jax.jit(functools.partial(patch_embed, patch_size=p))
    out = jax.block_until_ready(fn(x, weight, bias))
    assert out.shape == (B, (H // p) * (W // p), E)
    assert jnp.allclose(out, ref, atol=2e-2, rtol=2e-2)

    # f32 compute path matches the conv reference tightly.
    fn32 = jax.jit(functools.partial(patch_embed, patch_size=p,
                                     compute_dtype=jnp.float32))
    out32 = jax.block_until_ready(fn32(x, weight, bias))
    assert jnp.allclose(out32, ref, atol=1e-4, rtol=1e-4)

    # Ragged M (partial last row block, masked writeback) + padded-E path.
    H2 = W2 = 20                                  # Hp = Wp = 5 -> M = 2 * 25 = 50
    x2 = jax.random.normal(jax.random.PRNGKey(1), (B, C, H2, W2), jnp.float32)
    out2 = jax.block_until_ready(fn32(x2, weight, bias))
    ref2 = _conv_reference(x2, weight, bias, p)
    assert out2.shape == (B, (H2 // p) * (W2 // p), E)
    assert jnp.allclose(out2, ref2, atol=1e-4, rtol=1e-4)

    print("KERNEL_OK")
</pallas_src>

<mosaic_0001>
module attributes {stable_mosaic.version = 11 : i64} {
  func.func @patch_embed_kernel(%arg0: i32, %arg1: memref<16x64xbf16, #tpu.memory_space<vmem>>, %arg2: memref<64x128xbf16, #tpu.memory_space<vmem>>, %arg3: memref<1x128xf32, #tpu.memory_space<vmem>>, %arg4: memref<16x128xf32, #tpu.memory_space<vmem>>) attributes {dimension_semantics = [#tpu.dimension_semantics<parallel>], iteration_bounds = array<i64: 2>, scalar_prefetch = 0 : i64, scratch_operands = 0 : i64, tpu.core_type = #tpu.core_type<tc>, window_params = [{transform_indices = @transform_0, window_bounds = array<i64: 16, 64>}, {pipeline_mode = #tpu.pipeline_mode<synchronous>, transform_indices = @transform_1, window_bounds = array<i64: 64, 128>}, {pipeline_mode = #tpu.pipeline_mode<synchronous>, transform_indices = @transform_2, window_bounds = array<i64: 1, 128>}, {transform_indices = @transform_3, window_bounds = array<i64: 16, 128>}]} {
    %c0 = arith.constant 0 : index
    %c0_0 = arith.constant 0 : index
    %0 = vector.load %arg1[%c0, %c0_0] : memref<16x64xbf16, #tpu.memory_space<vmem>>, vector<16x64xbf16>
    %c0_1 = arith.constant 0 : index
    %c0_2 = arith.constant 0 : index
    %1 = vector.load %arg2[%c0_1, %c0_2] : memref<64x128xbf16, #tpu.memory_space<vmem>>, vector<64x128xbf16>
    %cst = arith.constant dense<0.000000e+00> : vector<16x128xf32>
    %2 = tpu.matmul %0, %1, %cst {dimension_numbers = #tpu.dot_dimension_numbers<[1], [0], [0], [1], [0, 0, 1, 1], [], []>} : vector<16x64xbf16>, vector<64x128xbf16>, vector<16x128xf32> -> vector<16x128xf32>
    %c0_3 = arith.constant 0 : index
    %c0_4 = arith.constant 0 : index
    %3 = vector.load %arg3[%c0_3, %c0_4] : memref<1x128xf32, #tpu.memory_space<vmem>>, vector<1x128xf32>
    %4 = vector.broadcast %3 : vector<1x128xf32> to vector<16x128xf32>
    %5 = arith.addf %2, %4 : vector<16x128xf32>
    %c0_5 = arith.constant 0 : index
    %c0_6 = arith.constant 0 : index
    %6 = vector.load %arg4[%c0_5, %c0_6] : memref<16x128xf32, #tpu.memory_space<vmem>>, vector<16x128xf32>
    tpu.vector_store %arg4[%c0_5, %c0_6], %5 {strides = array<i32>} : memref<16x128xf32, #tpu.memory_space<vmem>>, vector<16x128xf32>,
    return
  }
  func.func @transform_0(%arg0: i32) -> (i32, i32) {
    %c0_i32 = arith.constant 0 : i32
    %c0_i32_0 = arith.constant 0 : i32
    return %arg0, %c0_i32 : i32, i32
  }
  func.func @transform_1(%arg0: i32) -> (i32, i32) {
    %c0_i32 = arith.constant 0 : i32
    %c0_i32_0 = arith.constant 0 : i32
    %c0_i32_1 = arith.constant 0 : i32
    return %c0_i32, %c0_i32_0 : i32, i32
  }
  func.func @transform_2(%arg0: i32) -> (i32, i32) {
    %c0_i32 = arith.constant 0 : i32
    %c0_i32_0 = arith.constant 0 : i32
    %c0_i32_1 = arith.constant 0 : i32
    return %c0_i32, %c0_i32_0 : i32, i32
  }
  func.func @transform_3(%arg0: i32) -> (i32, i32) {
    %c0_i32 = arith.constant 0 : i32
    %c0_i32_0 = arith.constant 0 : i32
    return %arg0, %c0_i32 : i32, i32
  }
}

</mosaic_0001>

<llo_original>
// kernel: patch_embed.2
$region0: #{patch_embed.2}
  #allocation0 [shape = 'u32[]', space=smem, size = 0x4, offset = 0x4, fixed_abs, tag = 'smem constant byte address 0x4 - core index']
  #allocation1 [shape = 'u32[72,128]{1,0:T(1,128)}', space=vmem, size = 0x9000, scoped, tag = 'internal scratch']
  #allocation2 [shape = 'u32[2048]{0}', space=vmem, size = 0x2000, scoped, tag = 'scoped memory for patch_embed.2']
  #allocation3 [shape = 'u32[2048]{0}', space=vmem, size = 0x2000, scoped, tag = 'scoped memory for patch_embed.2']
  #allocation4 [shape = 'u32[2048]{0}', space=vmem, size = 0x2000, scoped, tag = 'scoped memory for patch_embed.2']
  #allocation5 [shape = 'u32[2048]{0}', space=vmem, size = 0x2000, scoped, tag = 'scoped memory for patch_embed.2']
  #allocation6 [shape = 'u32[2048]{0}', space=vmem, size = 0x2000, scoped, tag = 'scoped memory for patch_embed.2']
  #allocation7 [shape = 'u32[2048]{0}', space=vmem, size = 0x2000, scoped, tag = 'scoped memory for patch_embed.2']
  #allocation8 [shape = 'u32[2048]{0}', space=vmem, size = 0x2000, scoped, tag = 'scoped memory for patch_embed.2']
  #allocation9 [shape = 'u32[2048]{0}', space=vmem, size = 0x2000, scoped, tag = 'scoped memory for patch_embed.2']
  #allocation10 [shape = 'u32[2048]{0}', space=vmem, size = 0x2000, scoped, tag = 'scoped memory for patch_embed.2']
  #allocation11 [shape = 'u32[2048]{0}', space=vmem, size = 0x2000, scoped, tag = 'scoped memory for patch_embed.2']
  %s0 = inlined_call_operand.vmem [shape: bf16[32,64], index: 0, kind: input, shape index: {}]
  %s1 = inlined_call_operand.vmem [shape: bf16[64,32], index: 1, kind: input, shape index: {}]
  %s2 = inlined_call_operand.<no memory space> [shape: bf16[], index: 2, kind: input, shape index: {}]
  %s3 = inlined_call_operand.vmem [shape: f32[1,32], index: 3, kind: input, shape index: {}]
  %s4 = inlined_call_operand.<no memory space> [shape: f32[], index: 4, kind: input, shape index: {}]
  %s5 = inlined_call_operand.hbm [shape: f32[32,128], index: 5, kind: output, shape index: {}]
  %s6 = sld [smem:[#allocation0]]
  $region45: #{patch_embed.2} parent=0
    _
  %s8 = ssub.s32 1, %s6
  %s9 = scalar_select 0, %s8, %s6
  %v10 = vstv %s2
  %v11 = vunpack.i.l.bf16 %v10
  %v13 = vunpack.i.h.bf16 %v10
  %v15 = vstv %s4
  $region1: #{patch_embed.2} parent=0
    #allocation12 [shape = 'u8[16384]{0}', space=vmem, size = 0x4000, scoped, tag = 'output window, operand 0']
    #allocation13 [shape = 's32[2]{0}', space=sflag, size = 0x8, scoped, tag = 'scoped memory for patch_embed.2']
    %16 = vsyncpa [#allocation13], 0
    %s17 = scalar_lea.sflag [#allocation13], 1
    %18 = vsyncpa %s17, 0
    loop: start=0, step=1, limit=4
    $region2: #{patch_embed.2} parent=1 // loop_pre_header
      _
    $region3: #{patch_embed.2} parent=1 // loop_header
      %s20 = sphi 0, %s24
      %p21 = scmp.ge.s32.totalorder %s20, 4
      %s30 = sphi 0, %s32
      %s33 = sphi 0, %s30
      %s34 = sphi 0, %s33
      %s50 = sphi 0, %s34
      %s54 = sphi 0, %s54
      %s56 = sphi 0, %s54
      %s57 = sphi 0, %s56
      %s71 = sphi 0, %s57
      %s75 = sphi 0, %s75
      %s77 = sphi 0, %s75
      %s78 = sphi 0, %s77
      %s92 = sphi 0, %s78
      %s98 = sphi 0, %s100
      %s101 = sphi 0, %s98
      %s102 = sphi 0, %s101
      %s118 = sphi 0, %s102
    $region4: #{patch_embed.2} parent=1 // loop_header_branch
      %23 = sbr.rel (%p21) target = $region8
    $region5: #{patch_embed.2} parent=1 // loop_body
      %s25 = ssub.s32 %s20, 1
      %s26 = ssub.s32 %s20, 2
      %s27 = sadd.s32 %s20, 1
      %s28 = ssub.s32 %s20, %s27
      %p29 = scmp.eq.s32.totalorder %s28, 0
      %s31 = sadd.s32 %s30, 1
      %s32 = scalar_select %p29, %s30, %s31
      %p35 = pneg %p29
      %p36 = scmp.eq.s32.totalorder %s20, 1
      %p37 = por %p35, %p36
      %p38 = scmp.ne.s32.totalorder %s30, %s33
      %p39 = scmp.eq.s32.totalorder %s20, 0
      %p40 = por %p38, %p39
      %p41 = scmp.ne.s32.totalorder %s30, %s33
      %p42 = scmp.eq.s32.totalorder %s25, 1
      %p43 = por %p41, %p42
      %p44 = scmp.ne.s32.totalorder %s33, %s34
      %p45 = scmp.eq.s32.totalorder %s25, 0
      %p46 = por %p44, %p45
      %p47 = scmp.ne.s32.totalorder %s33, %s34
      %p48 = scmp.eq.s32.totalorder %s26, 1
      %p49 = por %p47, %p48
      %p51 = scmp.ne.s32.totalorder %s34, %s50
      %p52 = scmp.eq.s32.totalorder %s26, 0
      %p53 = por %p51, %p52
      %s55 = sadd.s32 %s54, 1
      %p58 = scmp.eq.s32.totalorder %s20, 1
      %p59 = scmp.ne.s32.totalorder %s54, %s56
      %p60 = scmp.eq.s32.totalorder %s20, 0
      %p61 = por %p59, %p60
      %p62 = scmp.ne.s32.totalorder %s54, %s56
      %p63 = scmp.eq.s32.totalorder %s25, 1
      %p64 = por %p62, %p63
      %p65 = scmp.ne.s32.totalorder %s56, %s57
      %p66 = scmp.eq.s32.totalorder %s25, 0
      %p67 = por %p65, %p66
      %p68 = scmp.ne.s32.totalorder %s56, %s57
      %p69 = scmp.eq.s32.totalorder %s26, 1
      %p70 = por %p68, %p69
      %p72 = scmp.ne.s32.totalorder %s57, %s71
      %p73 = scmp.eq.s32.totalorder %s26, 0
      %p74 = por %p72, %p73
      %s76 = sadd.s32 %s75, 1
      %p79 = scmp.eq.s32.totalorder %s20, 1
      %p80 = scmp.ne.s32.totalorder %s75, %s77
      %p81 = scmp.eq.s32.totalorder %s20, 0
      %p82 = por %p80, %p81
      %p83 = scmp.ne.s32.totalorder %s75, %s77
      %p84 = scmp.eq.s32.totalorder %s25, 1
      %p85 = por %p83, %p84
      %p86 = scmp.ne.s32.totalorder %s77, %s78
      %p87 = scmp.eq.s32.totalorder %s25, 0
      %p88 = por %p86, %p87
      %p89 = scmp.ne.s32.totalorder %s77, %s78
      %p90 = scmp.eq.s32.totalorder %s26, 1
      %p91 = por %p89, %p90
      %p93 = scmp.ne.s32.totalorder %s78, %s92
      %p94 = scmp.eq.s32.totalorder %s26, 0
      %p95 = por %p93, %p94
      %s96 = ssub.s32 %s20, %s27
      %p97 = scmp.eq.s32.totalorder %s96, 0
      %s99 = sadd.s32 %s98, 1
      %s100 = scalar_select %p97, %s98, %s99
      %p103 = pneg %p97
      %p104 = scmp.eq.s32.totalorder %s20, 1
      %p105 = por %p103, %p104
      %p106 = scmp.ne.s32.totalorder %s98, %s101
      %p107 = scmp.eq.s32.totalorder %s20, 0
      %p108 = por %p106, %p107
      %p109 = scmp.ne.s32.totalorder %s98, %s101
      %p110 = scmp.eq.s32.totalorder %s25, 1
      %p111 = por %p109, %p110
      %p112 = scmp.ne.s32.totalorder %s101, %s102
      %p113 = scmp.eq.s32.totalorder %s25, 0
      %p114 = por %p112, %p113
      %p115 = scmp.ne.s32.totalorder %s101, %s102
      %p116 = scmp.eq.s32.totalorder %s26, 1
      %p117 = por %p115, %p116
      %p119 = scmp.ne.s32.totalorder %s102, %s118
      %p120 = scmp.eq.s32.totalorder %s26, 0
      %p121 = por %p119, %p120
      %p122 = scmp.le.s32.totalorder 1, %s20
      %p123 = scmp.lt.s32.totalorder %s20, 3
      %p124 = pnand %p122, %p123
      %p125 = pneg %p124
      // Predicated region
      $region9: #{patch_embed.2} parent=5 // pred_check
        _
      $region10: #{patch_embed.2} parent=5 // pred_check_branch
        %127 = sbr.rel (%p124) target = $region12
      $region11: #{patch_embed.2} parent=5 // pred_region
        %s128 = ssub.s32 %s20, 1
        // Predicated region
        $region13: #{patch_embed.2} parent=11 // pred_check
          %p129 = pneg %p67
        $region14: #{patch_embed.2} parent=11 // pred_check_branch
          %131 = sbr.rel (%p129) target = $region16
        $region15: #{patch_embed.2} parent=11 // pred_region
          _
        $region16: #{patch_embed.2} parent=11 // pred_fallthru
          _
        // Predicated region
        $region17: #{patch_embed.2} parent=11 // pred_check
          %p132 = pneg %p88
        $region18: #{patch_embed.2} parent=11 // pred_check_branch
          %134 = sbr.rel (%p132) target = $region20
        $region19: #{patch_embed.2} parent=11 // pred_region
          _
        $region20: #{patch_embed.2} parent=11 // pred_fallthru
          _
      $region12: #{patch_embed.2} parent=5 // pred_fallthru
        _
      %p135 = scmp.lt.s32.totalorder %s20, 2
      // Predicated region
      $region21: #{patch_embed.2} parent=5 // pred_check
        %p136 = pneg %p135
      $region22: #{patch_embed.2} parent=5 // pred_check_branch
        %138 = sbr.rel (%p136) target = $region24
      $region23: #{patch_embed.2} parent=5 // pred_region
        // Predicated region
        $region25: #{patch_embed.2} parent=23 // pred_check
          %p139 = pneg %p40
        $region26: #{patch_embed.2} parent=23 // pred_check_branch
          %141 = sbr.rel (%p139) target = $region28
        $region27: #{patch_embed.2} parent=23 // pred_region
          %s142 = smul.u32 2, %s20
          %p143 = scmp.lt.s32.totalorder %s142, 3
          %s144 = scalar_select %p143, %s142, 3
          %s145 = smul.addr %s144, 4
          %s146 = scalar_lea.vmem %s0, %s145
          %s147 = smul.u32 2, %s20
        $region28: #{patch_embed.2} parent=23 // pred_fallthru
          _
      $region24: #{patch_embed.2} parent=5 // pred_fallthru
        _
      %p148 = scmp.le.s32.totalorder 1, %s20
      %p149 = scmp.lt.s32.totalorder %s20, 3
      %p150 = pnand %p148, %p149
      %p151 = pneg %p150
      // Predicated region
      $region29: #{patch_embed.2} parent=5 // pred_check
        _
      $region30: #{patch_embed.2} parent=5 // pred_check_branch
        %153 = sbr.rel (%p150) target = $region32
      $region31: #{patch_embed.2} parent=5 // pred_region
        #allocation14 [shape = 'u8[16384]{0}', space=vmem, size = 0x4000, dematerialized = true, scoped, tag = 'FusionAdapter Buffer %fusion.1 = bf16[64,128]{1,0:T(8,128)(2,1)} fusion(%param_1.3, %param_2.2), kind=kLoop, calls=%fused_computation.2.clone, metadata={op_name="jit(patch_embed)/jit(_pad)/pad" stack_frame_id=13}']
        #allocation15 [shape = 'u8[512]{0}', space=vmem, size = 0x400, dematerialized = true, scoped, tag = 'FusionAdapter Buffer %fusion.2 = f32[1,128]{1,0:T(1,128)} fusion(%param_3.1, %param_4), kind=kLoop, calls=%fused_computation.3.clone, metadata={op_name="jit(patch_embed)/jit(_pad)/pad" stack_frame_id=14}']
        %s154 = ssub.s32 %s20, 1
        %s155 = smul.u32 2, %s25
        %p156 = scmp.lt.s32.totalorder %s155, 3
        %s157 = scalar_select %p156, %s155, 3
        %s158 = smul.addr %s157, 4
        %s159 = scalar_lea.vmem %s0, %s158
        %p160 = pneg %p46
        %p161 = pneg %p43
        %p162 = pneg %p67
        %p163 = pneg %p64
        %p164 = pneg %p88
        %p165 = pneg %p85
        %p166 = pneg %p114
        %p167 = pneg %p111
        %s168 = sand.u32 %s101, 1
        %s169 = scalar_lea.sflag [#allocation13], %s168
        %s170 = sand.u32 %s101, 1
        %s171 = smul.addr %s170, 16
        %s172 = scalar_lea.vmem [#allocation12], %s171
        %s173 = smul.u32 2, %s25
        %p174 = scmp.lt.s32.totalorder %s173, 3
        %s175 = scalar_select %p174, %s173, 3
        %s176 = smul.addr %s175, 4
        %s177 = scalar_lea.vmem %s0, %s176
        %s178 = smul.u32 2, %s25
        %s179 = smul.u32 2, %s25
        %s181 = sor.u32 255, 127
        %s182 = sand.u32 %s181, 85
        %s183 = sshrl.u32 %s182, 1
        %s184 = sor.u32 %s182, %s183
        %s185 = sand.u32 51, %s184
        %s186 = sshrl.u32 %s185, 2
        %s187 = sor.u32 %s185, %s186
        %s188 = sand.u32 15, %s187
        %v189 = vld [vmem:[%s1] sm:%s188]
        %v190 = vunpack.c.l.bf16 %v189
        %v191 = vunpack.c.h.bf16 %v189
        %v192 = vlaneseq
        %v193 = vand.u32 %v192, 127
        %vm195 = vcmp.lt.s32.totalorder %v193, 32
        %v196 = vsel %vm195, %v190, %v11
        %v197 = vpack.c.bf16 0.0, %v196
        %s199 = ssub.s32 16, 1
        %200 = vst [vmem:[#allocation14] sm:%s199] %v197
        %s201 = scalar_lea.vmem %s1, 4
        %s203 = sor.u32 255, 127
        %s204 = sand.u32 %s203, 85
        %s205 = sshrl.u32 %s204, 1
        %s206 = sor.u32 %s204, %s205
        %s207 = sand.u32 51, %s206
        %s208 = sshrl.u32 %s207, 2
        %s209 = sor.u32 %s207, %s208
        %s210 = sand.u32 15, %s209
        %v211 = vld [vmem:[%s201] sm:%s210]
        %v212 = vunpack.c.l.bf16 %v211
        %v213 = vunpack.c.h.bf16 %v211
        %v214 = vlaneseq
        %v215 = vand.u32 %v214, 127
        %vm217 = vcmp.lt.s32.totalorder %v215, 32
        %v218 = vsel %vm217, %v212, %v11
        %s219 = scalar_lea.vmem [#allocation14], 4
        %v220 = vpack.c.bf16 0.0, %v218
        %s222 = ssub.s32 16, 1
        %223 = vst [vmem:[%s219] sm:%s222] %v220
        %s224 = scalar_lea.vmem %s1, 8
        %s226 = sor.u32 255, 127
        %s227 = sand.u32 %s226, 85
        %s228 = sshrl.u32 %s227, 1
        %s229 = sor.u32 %s227, %s228
        %s230 = sand.u32 51, %s229
        %s231 = sshrl.u32 %s230, 2
        %s232 = sor.u32 %s230, %s231
        %s233 = sand.u32 15, %s232
        %v234 = vld [vmem:[%s224] sm:%s233]
        %v235 = vunpack.c.l.bf16 %v234
        %v236 = vunpack.c.h.bf16 %v234
        %v237 = vlaneseq
        %v238 = vand.u32 %v237, 127
        %vm240 = vcmp.lt.s32.totalorder %v238, 32
        %v241 = vsel %vm240, %v235, %v11
        %s242 = scalar_lea.vmem [#allocation14], 8
        %v243 = vpack.c.bf16 0.0, %v241
        %s245 = ssub.s32 16, 1
        %246 = vst [vmem:[%s242] sm:%s245] %v243
        %s247 = scalar_lea.vmem %s1, 12
        %s249 = sor.u32 255, 127
        %s250 = sand.u32 %s249, 85
        %s251 = sshrl.u32 %s250, 1
        %s252 = sor.u32 %s250, %s251
        %s253 = sand.u32 51, %s252
        %s254 = sshrl.u32 %s253, 2
        %s255 = sor.u32 %s253, %s254
        %s256 = sand.u32 15, %s255
        %v257 = vld [vmem:[%s247] sm:%s256]
        %v258 = vunpack.c.l.bf16 %v257
        %v259 = vunpack.c.h.bf16 %v257
        %v260 = vlaneseq
        %v261 = vand.u32 %v260, 127
        %vm263 = vcmp.lt.s32.totalorder %v261, 32
        %v264 = vsel %vm263, %v258, %v11
        %s265 = scalar_lea.vmem [#allocation14], 12
        %v266 = vpack.c.bf16 0.0, %v264
        %s268 = ssub.s32 16, 1
        %269 = vst [vmem:[%s265] sm:%s268] %v266
        %s270 = scalar_lea.vmem %s1, 16
        %s272 = sor.u32 255, 127
        %s273 = sand.u32 %s272, 85
        %s274 = sshrl.u32 %s273, 1
        %s275 = sor.u32 %s273, %s274
        %s276 = sand.u32 51, %s275
        %s277 = sshrl.u32 %s276, 2
        %s278 = sor.u32 %s276, %s277
        %s279 = sand.u32 15, %s278
        %v280 = vld [vmem:[%s270] sm:%s279]
        %v281 = vunpack.c.l.bf16 %v280
        %v282 = vunpack.c.h.bf16 %v280
        %v283 = vlaneseq
        %v284 = vand.u32 %v283, 127
        %vm286 = vcmp.lt.s32.totalorder %v284, 32
        %v287 = vsel %vm286, %v281, %v11
        %s288 = scalar_lea.vmem [#allocation14], 16
        %v289 = vpack.c.bf16 0.0, %v287
        %s291 = ssub.s32 16, 1
        %292 = vst [vmem:[%s288] sm:%s291] %v289
        %s293 = scalar_lea.vmem %s1, 20
        %s295 = sor.u32 255, 127
        %s296 = sand.u32 %s295, 85
        %s297 = sshrl.u32 %s296, 1
        %s298 = sor.u32 %s296, %s297
        %s299 = sand.u32 51, %s298
        %s300 = sshrl.u32 %s299, 2
        %s301 = sor.u32 %s299, %s300
        %s302 = sand.u32 15, %s301
        %v303 = vld [vmem:[%s293] sm:%s302]
        %v304 = vunpack.c.l.bf16 %v303
        %v305 = vunpack.c.h.bf16 %v303
        %v306 = vlaneseq
        %v307 = vand.u32 %v306, 127
        %vm309 = vcmp.lt.s32.totalorder %v307, 32
        %v310 = vsel %vm309, %v304, %v11
        %s311 = scalar_lea.vmem [#allocation14], 20
        %v312 = vpack.c.bf16 0.0, %v310
        %s314 = ssub.s32 16, 1
        %315 = vst [vmem:[%s311] sm:%s314] %v312
        %s316 = scalar_lea.vmem %s1, 24
        %s318 = sor.u32 255, 127
        %s319 = sand.u32 %s318, 85
        %s320 = sshrl.u32 %s319, 1
        %s321 = sor.u32 %s319, %s320
        %s322 = sand.u32 51, %s321
        %s323 = sshrl.u32 %s322, 2
        %s324 = sor.u32 %s322, %s323
        %s325 = sand.u32 15, %s324
        %v326 = vld [vmem:[%s316] sm:%s325]
        %v327 = vunpack.c.l.bf16 %v326
        %v328 = vunpack.c.h.bf16 %v326
        %v329 = vlaneseq
        %v330 = vand.u32 %v329, 127
        %vm332 = vcmp.lt.s32.totalorder %v330, 32
        %v333 = vsel %vm332, %v327, %v11
        %s334 = scalar_lea.vmem [#allocation14], 24
        %v335 = vpack.c.bf16 0.0, %v333
        %s337 = ssub.s32 16, 1
        %338 = vst [vmem:[%s334] sm:%s337] %v335
        %s339 = scalar_lea.vmem %s1, 28
        %s341 = sor.u32 255, 127
        %s342 = sand.u32 %s341, 85
        %s343 = sshrl.u32 %s342, 1
        %s344 = sor.u32 %s342, %s343
        %s345 = sand.u32 51, %s344
        %s346 = sshrl.u32 %s345, 2
        %s347 = sor.u32 %s345, %s346
        %s348 = sand.u32 15, %s347
        %v349 = vld [vmem:[%s339] sm:%s348]
        %v350 = vunpack.c.l.bf16 %v349
        %v351 = vunpack.c.h.bf16 %v349
        %v352 = vlaneseq
        %v353 = vand.u32 %v352, 127
        %vm355 = vcmp.lt.s32.totalorder %v353, 32
        %v356 = vsel %vm355, %v350, %v11
        %s357 = scalar_lea.vmem [#allocation14], 28
        %v358 = vpack.c.bf16 0.0, %v356
        %s360 = ssub.s32 16, 1
        %361 = vst [vmem:[%s357] sm:%s360] %v358
        %v362 = vld [vmem:[%s3] sm:$0x1]
        %v363 = vlaneseq
        %v364 = vshrl.u32 %v363, 7
        %vm366 = vcmp.lt.s32.totalorder %v364, 1
        %v367 = vsel %vm366, %v362, %v15
        %v368 = vlaneseq
        %v369 = vand.u32 %v368, 127
        %vm371 = vcmp.lt.s32.totalorder %v369, 32
        %v372 = vsel %vm371, %v367, %v15
        %s374 = ssub.s32 2, 1
        %375 = vst [vmem:[#allocation15] sm:%s374] %v372
        %v377 = vld [vmem:[%s177] sm:$0xf]
        %v378 = vld [vmem:[%s177 + $0x4] sm:$0xf]
        %v379 = vld [vmem:[#allocation14] sm:$0xf]
        %v380 = vld [vmem:[#allocation14 + $0x4] sm:$0xf]
        %v381 = vld [vmem:[#allocation14 + $0x8] sm:$0xf]
        %v382 = vld [vmem:[#allocation14 + $0xc] sm:$0xf]
        %v383 = vld [vmem:[#allocation14 + $0x10] sm:$0xf]
        %v384 = vld [vmem:[#allocation14 + $0x14] sm:$0xf]
        %v385 = vld [vmem:[#allocation14 + $0x18] sm:$0xf]
        %v386 = vld [vmem:[#allocation14 + $0x1c] sm:$0xf]
        %v387 = vld [vmem:[#allocation15] sm:$0x1]
        %v389 = vperm.slane %v387, 0
        %v393 = vunpack.c.l.b16 %v377
        %v394 = vunpack.c.l.b16 %v378
        %v395 = vpack.c.b16 %v394, %v393
        %v404 = vunpack.c.l.b16 %v379
        %v405 = vunpack.c.l.b16 %v380
        %v406 = vunpack.c.l.b16 %v381
        %v407 = vunpack.c.l.b16 %v382
        %v408 = vunpack.c.l.b16 %v383
        %v409 = vunpack.c.l.b16 %v384
        %v410 = vunpack.c.l.b16 %v385
        %v411 = vunpack.c.l.b16 %v386
        %v412 = vpack.c.b16 %v405, %v404
        %v413 = vpack.c.b16 %v407, %v406
        %v414 = vpack.c.b16 %v409, %v408
        %v415 = vpack.c.b16 %v411, %v410
        %vm420 = vcmask 523264
        %v422 = vsel %vm420, %v395, 0
        %424 = vmatpush.bf16.msra.mxu0 0
        %425 = vmatpush.bf16.msra.mxu0 0
        %426 = vmatpush.bf16.msra.mxu0 0
        %427 = vmatpush.bf16.msra.mxu0 0
        %428 = vmatpush.bf16.msra.mxu0 %v415
        %429 = vmatpush.bf16.msra.mxu0 %v414
        %430 = vmatpush.bf16.msra.mxu0 %v413
        %431 = vmatpush.bf16.msra.mxu0 %v412
        %432 = vmatmul.bf16.gmra.mxu0 %v422
        %v433 = vpop.f32.mrf.mxu0
        %v434 = vadd.f32 %v389, %v433
        %v435 = vpop.f32.mrf.mxu0
        %v436 = vadd.f32 %v389, %v435
        %437 = vdwg.mxu0
        %438 = vst [vmem:[%s172] sm:$0xff] %v434
        %439 = vst [vmem:[%s172 + $0x8] sm:$0xff] %v436
        %s440 = sand.u32 %s101, 1
        %s441 = scalar_lea.sflag [#allocation13], %s440
        %s442 = sand.u32 %s101, 1
        %s443 = smul.addr %s442, 16
        %s444 = scalar_lea.vmem [#allocation12], %s443
        // Predicated region
        $region33: #{patch_embed.2} parent=31 // pred_check
          %p445 = pneg %p111
        $region34: #{patch_embed.2} parent=31 // pred_check_branch
          %447 = sbr.rel (%p445) target = $region36
        $region35: #{patch_embed.2} parent=31 // pred_region
          %s448 = smul.u32 2, %s25
          %450 = vsyncadd %s441, 0
          %s451 = smul.addr %s448, 8
          %s452 = scalar_lea.hbm %s5, %s451
          %s453 = sshll.u32 %s444, 4
          %s454 = int_to_ptr.vmem [resolvable:$true] %s453
          %s455 = sshll.u32 %s452, 4
          %s456 = int_to_ptr.hbm [resolvable:$true] %s455
          %461 = dma.vmem_to_hbm [thread:$0]  %s454, 256, %s456, %s441, 128, 128, 8
        $region36: #{patch_embed.2} parent=31 // pred_fallthru
          _
      $region32: #{patch_embed.2} parent=5 // pred_fallthru
        _
      %p462 = scmp.le.s32.totalorder 2, %s20
      // Predicated region
      $region37: #{patch_embed.2} parent=5 // pred_check
        %p463 = pneg %p462
      $region38: #{patch_embed.2} parent=5 // pred_check_branch
        %465 = sbr.rel (%p463) target = $region40
      $region39: #{patch_embed.2} parent=5 // pred_region
        %s466 = ssub.s32 %s20, 2
        // Predicated region
        $region41: #{patch_embed.2} parent=39 // pred_check
          %p467 = pneg %p117
        $region42: #{patch_embed.2} parent=39 // pred_check_branch
          %469 = sbr.rel (%p467) target = $region44
        $region43: #{patch_embed.2} parent=39 // pred_region
          %s470 = sand.u32 %s102, 1
          %s471 = scalar_lea.sflag [#allocation13], %s470
          %s472 = sand.u32 %s102, 1
          %s473 = smul.addr %s472, 16
          %s474 = scalar_lea.vmem [#allocation12], %s473
          %476 = dma.done %s471, 256
        $region44: #{patch_embed.2} parent=39 // pred_fallthru
          _
      $region40: #{patch_embed.2} parent=5 // pred_fallthru
        _
    $region6: #{patch_embed.2} parent=1 // loop_footer
      %s24 = sadd.s32 1, %s20
    $region7: #{patch_embed.2} parent=1 // loop_footer_branch
      %19 = sbr.rel target = $region3
    $region8: #{patch_embed.2} parent=1 // loop_exit
      _
    %477 = vsyncpa [#allocation13], 1
    %s478 = scalar_lea.sflag [#allocation13], 1
    %479 = vsyncpa %s478, 1

</llo_original>
